<compile_context>
chip_gen: v5e
topology: v5e:2x2
jax: 0.10.0
libtpu: 0.0.40
codegen_flags: <defaults>
</compile_context>

<pallas_src>
import jax
import jax.numpy as jnp
from jax.experimental import pallas as pl
from jax.experimental.pallas import tpu as pltpu

IN_FEATURES = 7
HIDDEN = 512
OUT_FEATURES = 2
OUT_PAD = 128                  # lane-dense output slab


def _round_up(x, m):
    return (x + m - 1) // m * m


def mlp_kernel(x_ref, w1_ref, b1_ref, w2_ref, b2_ref, w3_ref, b3_ref, o_ref):
    # x arrives f32 (TB, 7); cast to bf16 in-kernel (rides in VALU slack under
    # the MXU-bound matmuls).  Accumulation, bias adds and ReLU stay f32.
    x = x_ref[...].astype(jnp.bfloat16)
    h1 = jnp.dot(x, w1_ref[...], preferred_element_type=jnp.float32) + b1_ref[...]
    h1 = jnp.maximum(h1, 0.0)                                        # f32 ReLU
    h2 = jnp.dot(h1.astype(jnp.bfloat16), w2_ref[...],
                 preferred_element_type=jnp.float32) + b2_ref[...]
    h2 = jnp.maximum(h2, 0.0)                                        # f32 ReLU
    logits = jnp.dot(h2.astype(jnp.bfloat16), w3_ref[...],
                     preferred_element_type=jnp.float32) + b3_ref[...]
    o_ref[...] = logits.astype(o_ref.dtype)                          # bf16 lane-dense (TB, 128) store


def prepare_params(params):
    """One-time device-side prep: bf16 matmul weights, f32 biases, padded w3/b3.

    Call once and reuse the result across forward calls so the per-call path
    never re-casts / re-pads the f32 parameters.
    """
    w3 = jnp.zeros((HIDDEN, OUT_PAD), jnp.bfloat16).at[:, :OUT_FEATURES].set(
        params["w3"].astype(jnp.bfloat16))                           # (512, 128)
    b3 = jnp.zeros((1, OUT_PAD), jnp.float32).at[:, :OUT_FEATURES].set(
        params["b3"].astype(jnp.float32))                            # (1, 128)
    prepared = {
        "w1": params["w1"].astype(jnp.bfloat16),                     # (7, 512)
        "b1": params["b1"].astype(jnp.float32),                      # (1, 512)
        "w2": params["w2"].astype(jnp.bfloat16),                     # (512, 512)
        "b2": params["b2"].astype(jnp.float32),                      # (1, 512)
        "w3": w3,
        "b3": b3,
    }
    # Materialize now so they persist as device arrays.
    return jax.tree_util.tree_map(jnp.asarray, prepared)


def _choose_tb(B):
    b16 = _round_up(B, 16)
    if b16 < 512:
        return b16                       # single small step; full batch in one tile
    # Large batch: big tiles to amortize the ~0.35 us/step grid overhead, but
    # keep >= 2 steps so v7x's two TensorCores both get work; align to the
    # 256-wide MXU M-tile (multiple of v5e's 128 as well).  Cap at 2048 to stay
    # well inside the scoped-VMEM default (~11 MiB/step at TB=2048).
    return min(2048, _round_up(pl.cdiv(b16, 2), 256))


def neural_network_forward(x, prepared, *, tb=None):
    """Forward pass of the MLP.  x: (B, ...) flattened to (B, 7)."""
    B = x.shape[0]
    x2d = x.reshape(B, -1).astype(jnp.float32)                       # nn.Flatten
    assert x2d.shape[1] == IN_FEATURES

    if tb is None:
        tb = _choose_tb(B)
    tb = max(16, _round_up(tb, 16))      # bf16 sublane pack; avoids relayouts
    B_pad = _round_up(B, tb)
    if B_pad > B:
        x2d = jnp.pad(x2d, ((0, B_pad - B), (0, 0)))                 # only the batch pad stays here

    flops = 2 * B_pad * (IN_FEATURES * HIDDEN + HIDDEN * HIDDEN + HIDDEN * OUT_PAD)
    bytes_accessed = (x2d.nbytes
                      + sum(int(v.nbytes) for v in prepared.values())
                      + B_pad * OUT_PAD * 2)

    out_pad = pl.pallas_call(
        mlp_kernel,
        out_shape=jax.ShapeDtypeStruct((B_pad, OUT_PAD), jnp.bfloat16),
        grid=(B_pad // tb,),
        in_specs=[
            pl.BlockSpec((tb, IN_FEATURES), lambda i: (i, 0)),       # x tile (pipelined)
            pl.BlockSpec((IN_FEATURES, HIDDEN), lambda i: (0, 0)),   # w1 (resident)
            pl.BlockSpec((1, HIDDEN), lambda i: (0, 0)),             # b1 (resident)
            pl.BlockSpec((HIDDEN, HIDDEN), lambda i: (0, 0)),        # w2 (resident)
            pl.BlockSpec((1, HIDDEN), lambda i: (0, 0)),             # b2 (resident)
            pl.BlockSpec((HIDDEN, OUT_PAD), lambda i: (0, 0)),       # w3 (resident, padded)
            pl.BlockSpec((1, OUT_PAD), lambda i: (0, 0)),            # b3 (resident, padded)
        ],
        out_specs=pl.BlockSpec((tb, OUT_PAD), lambda i: (i, 0)),
        compiler_params=pltpu.CompilerParams(
            dimension_semantics=("parallel",),                       # v7x: shard batch tiles over 2 TCs
        ),
        cost_estimate=pl.CostEstimate(
            flops=int(flops),
            transcendentals=0,
            bytes_accessed=int(bytes_accessed)),
    )(x2d, prepared["w1"], prepared["b1"], prepared["w2"], prepared["b2"],
      prepared["w3"], prepared["b3"])

    return out_pad[:B, :OUT_FEATURES].astype(jnp.float32)


def init_params(key):
    """Deterministic init matching PyTorch Linear shapes (stored transposed: (in, out))."""
    k1, k2, k3, k4, k5, k6 = jax.random.split(key, 6)

    def uniform(k, shape, fan_in):
        bound = 1.0 / jnp.sqrt(jnp.float32(fan_in))
        return jax.random.uniform(k, shape, jnp.float32, -bound, bound)

    return {
        "w1": uniform(k1, (IN_FEATURES, HIDDEN), IN_FEATURES),
        "b1": uniform(k2, (1, HIDDEN), IN_FEATURES),
        "w2": uniform(k3, (HIDDEN, HIDDEN), HIDDEN),
        "b2": uniform(k4, (1, HIDDEN), HIDDEN),
        "w3": uniform(k5, (HIDDEN, OUT_FEATURES), HIDDEN),
        "b3": uniform(k6, (1, OUT_FEATURES), HIDDEN),
    }


def reference_forward(x, params):
    """Pure-JAX reference mirroring the kernel's bf16 matmul-operand rounding
    (biases are added in f32, matching the in-kernel VPU adds)."""
    f32 = jnp.float32

    def r(a):  # bf16 round-trip (matmul operands are bf16 in the kernel)
        return a.astype(jnp.bfloat16).astype(f32)

    x2d = x.reshape(x.shape[0], -1).astype(f32)
    h1 = jnp.maximum(r(x2d) @ r(params["w1"]) + params["b1"], 0.0)
    h2 = jnp.maximum(r(h1) @ r(params["w2"]) + params["b2"], 0.0)
    return r(h2) @ r(params["w3"]) + params["b3"]


if __name__ == "__main__":
    key = jax.random.PRNGKey(0)
    pkey, xkey = jax.random.split(key)
    params = init_params(pkey)
    prepared = prepare_params(params)      # one-time weight cast/pad, reused below

    # Small batch, matching the original module's usage (single full-batch tile).
    B = 8
    x = jax.random.normal(xkey, (B, IN_FEATURES), dtype=jnp.float32)
    out = neural_network_forward(x, prepared)
    jax.block_until_ready(out)
    ref = reference_forward(x, params)
    assert out.shape == (B, OUT_FEATURES)
    assert jnp.allclose(out, ref, atol=2e-2, rtol=2e-2), float(jnp.max(jnp.abs(out - ref)))

    # Ragged mid-size batch with user-supplied tb: exercises multi-step grid,
    # resident weights and batch padding.
    B2 = 300
    x2 = jax.random.normal(jax.random.fold_in(xkey, 1), (B2, IN_FEATURES), dtype=jnp.float32)
    out2 = neural_network_forward(x2, prepared, tb=128)
    jax.block_until_ready(out2)
    ref2 = reference_forward(x2, params)
    assert out2.shape == (B2, OUT_FEATURES)
    assert jnp.allclose(out2, ref2, atol=2e-2, rtol=2e-2), float(jnp.max(jnp.abs(out2 - ref2)))

    # Larger batch with auto tb: exercises the >=2-step, 256-aligned tile path.
    B3 = 1100
    x3 = jax.random.normal(jax.random.fold_in(xkey, 2), (B3, IN_FEATURES), dtype=jnp.float32)
    out3 = neural_network_forward(x3, prepared)
    jax.block_until_ready(out3)
    ref3 = reference_forward(x3, params)
    assert out3.shape == (B3, OUT_FEATURES)
    assert jnp.allclose(out3, ref3, atol=2e-2, rtol=2e-2), float(jnp.max(jnp.abs(out3 - ref3)))

    print("KERNEL_OK")
</pallas_src>

<mosaic_0001>
module attributes {stable_mosaic.version = 11 : i64} {
  func.func @mlp_kernel(%arg0: i32, %arg1: memref<16x7xf32, #tpu.memory_space<vmem>>, %arg2: memref<7x512xbf16, #tpu.memory_space<vmem>>, %arg3: memref<1x512xf32, #tpu.memory_space<vmem>>, %arg4: memref<512x512xbf16, #tpu.memory_space<vmem>>, %arg5: memref<1x512xf32, #tpu.memory_space<vmem>>, %arg6: memref<512x128xbf16, #tpu.memory_space<vmem>>, %arg7: memref<1x128xf32, #tpu.memory_space<vmem>>, %arg8: memref<16x128xbf16, #tpu.memory_space<vmem>>) attributes {dimension_semantics = [#tpu.dimension_semantics<parallel>], iteration_bounds = array<i64: 1>, scalar_prefetch = 0 : i64, scratch_operands = 0 : i64, tpu.core_type = #tpu.core_type<tc>, window_params = [{transform_indices = @transform_0, window_bounds = array<i64: 16, 7>}, {pipeline_mode = #tpu.pipeline_mode<synchronous>, transform_indices = @transform_1, window_bounds = array<i64: 7, 512>}, {pipeline_mode = #tpu.pipeline_mode<synchronous>, transform_indices = @transform_2, window_bounds = array<i64: 1, 512>}, {pipeline_mode = #tpu.pipeline_mode<synchronous>, transform_indices = @transform_3, window_bounds = array<i64: 512, 512>}, {pipeline_mode = #tpu.pipeline_mode<synchronous>, transform_indices = @transform_4, window_bounds = array<i64: 1, 512>}, {pipeline_mode = #tpu.pipeline_mode<synchronous>, transform_indices = @transform_5, window_bounds = array<i64: 512, 128>}, {pipeline_mode = #tpu.pipeline_mode<synchronous>, transform_indices = @transform_6, window_bounds = array<i64: 1, 128>}, {transform_indices = @transform_7, window_bounds = array<i64: 16, 128>}]} {
    %c0 = arith.constant 0 : index
    %c0_0 = arith.constant 0 : index
    %0 = vector.load %arg1[%c0, %c0_0] : memref<16x7xf32, #tpu.memory_space<vmem>>, vector<16x7xf32>
    %1 = arith.truncf %0 : vector<16x7xf32> to vector<16x7xbf16>
    %c0_1 = arith.constant 0 : index
    %c0_2 = arith.constant 0 : index
    %2 = vector.load %arg2[%c0_1, %c0_2] : memref<7x512xbf16, #tpu.memory_space<vmem>>, vector<7x512xbf16>
    %cst = arith.constant dense<0.000000e+00> : vector<16x512xf32>
    %3 = tpu.matmul %1, %2, %cst {dimension_numbers = #tpu.dot_dimension_numbers<[1], [0], [0], [1], [0, 0, 1, 1], [], []>} : vector<16x7xbf16>, vector<7x512xbf16>, vector<16x512xf32> -> vector<16x512xf32>
    %c0_3 = arith.constant 0 : index
    %c0_4 = arith.constant 0 : index
    %4 = vector.load %arg3[%c0_3, %c0_4] : memref<1x512xf32, #tpu.memory_space<vmem>>, vector<1x512xf32>
    %5 = vector.broadcast %4 : vector<1x512xf32> to vector<16x512xf32>
    %6 = arith.addf %3, %5 : vector<16x512xf32>
    %cst_5 = arith.constant 0.000000e+00 : f32
    %7 = vector.broadcast %cst_5 : f32 to vector<16x512xf32>
    %8 = arith.maximumf %6, %7 : vector<16x512xf32>
    %9 = arith.truncf %8 : vector<16x512xf32> to vector<16x512xbf16>
    %c0_6 = arith.constant 0 : index
    %c0_7 = arith.constant 0 : index
    %10 = vector.load %arg4[%c0_6, %c0_7] : memref<512x512xbf16, #tpu.memory_space<vmem>>, vector<512x512xbf16>
    %cst_8 = arith.constant dense<0.000000e+00> : vector<16x512xf32>
    %11 = tpu.matmul %9, %10, %cst_8 {dimension_numbers = #tpu.dot_dimension_numbers<[1], [0], [0], [1], [0, 0, 1, 1], [], []>} : vector<16x512xbf16>, vector<512x512xbf16>, vector<16x512xf32> -> vector<16x512xf32>
    %c0_9 = arith.constant 0 : index
    %c0_10 = arith.constant 0 : index
    %12 = vector.load %arg5[%c0_9, %c0_10] : memref<1x512xf32, #tpu.memory_space<vmem>>, vector<1x512xf32>
    %13 = vector.broadcast %12 : vector<1x512xf32> to vector<16x512xf32>
    %14 = arith.addf %11, %13 : vector<16x512xf32>
    %cst_11 = arith.constant 0.000000e+00 : f32
    %15 = vector.broadcast %cst_11 : f32 to vector<16x512xf32>
    %16 = arith.maximumf %14, %15 : vector<16x512xf32>
    %17 = arith.truncf %16 : vector<16x512xf32> to vector<16x512xbf16>
    %c0_12 = arith.constant 0 : index
    %c0_13 = arith.constant 0 : index
    %18 = vector.load %arg6[%c0_12, %c0_13] : memref<512x128xbf16, #tpu.memory_space<vmem>>, vector<512x128xbf16>
    %cst_14 = arith.constant dense<0.000000e+00> : vector<16x128xf32>
    %19 = tpu.matmul %17, %18, %cst_14 {dimension_numbers = #tpu.dot_dimension_numbers<[1], [0], [0], [1], [0, 0, 1, 1], [], []>} : vector<16x512xbf16>, vector<512x128xbf16>, vector<16x128xf32> -> vector<16x128xf32>
    %c0_15 = arith.constant 0 : index
    %c0_16 = arith.constant 0 : index
    %20 = vector.load %arg7[%c0_15, %c0_16] : memref<1x128xf32, #tpu.memory_space<vmem>>, vector<1x128xf32>
    %21 = vector.broadcast %20 : vector<1x128xf32> to vector<16x128xf32>
    %22 = arith.addf %19, %21 : vector<16x128xf32>
    %23 = arith.truncf %22 : vector<16x128xf32> to vector<16x128xbf16>
    %c0_17 = arith.constant 0 : index
    %c0_18 = arith.constant 0 : index
    %24 = vector.load %arg8[%c0_17, %c0_18] : memref<16x128xbf16, #tpu.memory_space<vmem>>, vector<16x128xbf16>
    tpu.vector_store %arg8[%c0_17, %c0_18], %23 {strides = array<i32>} : memref<16x128xbf16, #tpu.memory_space<vmem>>, vector<16x128xbf16>,
    return
  }
  func.func @transform_0(%arg0: i32) -> (i32, i32) {
    %c0_i32 = arith.constant 0 : i32
    %c0_i32_0 = arith.constant 0 : i32
    return %arg0, %c0_i32 : i32, i32
  }
  func.func @transform_1(%arg0: i32) -> (i32, i32) {
    %c0_i32 = arith.constant 0 : i32
    %c0_i32_0 = arith.constant 0 : i32
    %c0_i32_1 = arith.constant 0 : i32
    return %c0_i32, %c0_i32_0 : i32, i32
  }
  func.func @transform_2(%arg0: i32) -> (i32, i32) {
    %c0_i32 = arith.constant 0 : i32
    %c0_i32_0 = arith.constant 0 : i32
    %c0_i32_1 = arith.constant 0 : i32
    return %c0_i32, %c0_i32_0 : i32, i32
  }
  func.func @transform_3(%arg0: i32) -> (i32, i32) {
    %c0_i32 = arith.constant 0 : i32
    %c0_i32_0 = arith.constant 0 : i32
    %c0_i32_1 = arith.constant 0 : i32
    return %c0_i32, %c0_i32_0 : i32, i32
  }
  func.func @transform_4(%arg0: i32) -> (i32, i32) {
    %c0_i32 = arith.constant 0 : i32
    %c0_i32_0 = arith.constant 0 : i32
    %c0_i32_1 = arith.constant 0 : i32
    return %c0_i32, %c0_i32_0 : i32, i32
  }
  func.func @transform_5(%arg0: i32) -> (i32, i32) {
    %c0_i32 = arith.constant 0 : i32
    %c0_i32_0 = arith.constant 0 : i32
    %c0_i32_1 = arith.constant 0 : i32
    return %c0_i32, %c0_i32_0 : i32, i32
  }
  func.func @transform_6(%arg0: i32) -> (i32, i32) {
    %c0_i32 = arith.constant 0 : i32
    %c0_i32_0 = arith.constant 0 : i32
    %c0_i32_1 = arith.constant 0 : i32
    return %c0_i32, %c0_i32_0 : i32, i32
  }
  func.func @transform_7(%arg0: i32) -> (i32, i32) {
    %c0_i32 = arith.constant 0 : i32
    %c0_i32_0 = arith.constant 0 : i32
    return %arg0, %c0_i32 : i32, i32
  }
}

</mosaic_0001>

<llo_original>
// kernel: tpu_custom_call.1
$region0: #{tpu_custom_call.1}
  #allocation0 [shape = 'u32[]', space=smem, size = 0x4, offset = 0x4, fixed_abs, tag = 'smem constant byte address 0x4 - core index']
  #allocation1 [shape = 'u32[72,128]{1,0:T(1,128)}', space=vmem, size = 0x9000, scoped, tag = 'internal scratch']
  %s0 = inlined_call_operand.vmem [shape: f32[16,7], index: 0, kind: input, shape index: {}]
  %s1 = inlined_call_operand.vmem [shape: bf16[7,512], index: 1, kind: input, shape index: {}]
  %s2 = inlined_call_operand.vmem [shape: f32[1,512], index: 2, kind: input, shape index: {}]
  %s3 = inlined_call_operand.hbm [shape: bf16[512,512], index: 3, kind: input, shape index: {}]
  %s4 = inlined_call_operand.vmem [shape: f32[1,512], index: 4, kind: input, shape index: {}]
  %s5 = inlined_call_operand.hbm [shape: bf16[512,128], index: 5, kind: input, shape index: {}]
  %s6 = inlined_call_operand.vmem [shape: f32[1,128], index: 6, kind: input, shape index: {}]
  %s7 = inlined_call_operand.hbm [shape: bf16[16,128], index: 7, kind: output, shape index: {}]
  %s8 = sld [smem:[#allocation0]]
  $region46: #{tpu_custom_call.1} parent=0
    _
  %s10 = ssub.s32 1, %s8
  %s11 = scalar_select 0, %s10, %s8
  $region1: #{tpu_custom_call.1} parent=0
    #allocation2 [shape = 'u8[524288]{0}', space=vmem, size = 0x80000, scoped, tag = 'input window, operand 3, single buffered']
    #allocation3 [shape = 's32[1]{0}', space=sflag, size = 0x4, scoped, tag = 'scoped memory for tpu_custom_call.1']
    #allocation4 [shape = 's32[1]{0}', space=sflag, size = 0x4, scoped, tag = 'scoped memory for tpu_custom_call.1']
    #allocation5 [shape = 'u8[131072]{0}', space=vmem, size = 0x20000, scoped, tag = 'input window, operand 5, single buffered']
    #allocation6 [shape = 's32[1]{0}', space=sflag, size = 0x4, scoped, tag = 'scoped memory for tpu_custom_call.1']
    #allocation7 [shape = 'u8[4096]{0}', space=vmem, size = 0x1000, scoped, tag = 'output window, operand 0, single buffered']
    %12 = vsyncpa [#allocation3], 0
    %13 = vsyncpa [#allocation6], 0
    %14 = vsyncpa [#allocation4], 0
    // Predicated region
    $region2: #{tpu_custom_call.1} parent=1 // pred_check
      _
    $region3: #{tpu_custom_call.1} parent=1 // pred_check_branch
      %16 = sbr.rel (0) target = $region5
    $region4: #{tpu_custom_call.1} parent=1 // pred_region
      _
    $region5: #{tpu_custom_call.1} parent=1 // pred_fallthru
      _
    // Predicated region
    $region6: #{tpu_custom_call.1} parent=1 // pred_check
      _
    $region7: #{tpu_custom_call.1} parent=1 // pred_check_branch
      %18 = sbr.rel (0) target = $region9
    $region8: #{tpu_custom_call.1} parent=1 // pred_region
      _
    $region9: #{tpu_custom_call.1} parent=1 // pred_fallthru
      _
    // Predicated region
    $region10: #{tpu_custom_call.1} parent=1 // pred_check
      _
    $region11: #{tpu_custom_call.1} parent=1 // pred_check_branch
      %20 = sbr.rel (0) target = $region13
    $region12: #{tpu_custom_call.1} parent=1 // pred_region
      _
    $region13: #{tpu_custom_call.1} parent=1 // pred_fallthru
      _
    // Predicated region
    $region14: #{tpu_custom_call.1} parent=1 // pred_check
      _
    $region15: #{tpu_custom_call.1} parent=1 // pred_check_branch
      %22 = sbr.rel (0) target = $region17
    $region16: #{tpu_custom_call.1} parent=1 // pred_region
      %24 = vsyncadd [#allocation3], 0
      %s25 = sshll.u32 %s3, 4
      %s26 = int_to_ptr.hbm [resolvable:$true] %s25
      %s27 = sshll.u32 [#allocation2], 4
      %s28 = int_to_ptr.vmem [resolvable:$true] %s27
      %33 = dma.hbm_to_vmem [thread:$0]  %s26, 16384, %s28, [#allocation3], 256, 256, 16
    $region17: #{tpu_custom_call.1} parent=1 // pred_fallthru
      _
    // Predicated region
    $region18: #{tpu_custom_call.1} parent=1 // pred_check
      _
    $region19: #{tpu_custom_call.1} parent=1 // pred_check_branch
      %35 = sbr.rel (0) target = $region21
    $region20: #{tpu_custom_call.1} parent=1 // pred_region
      _
    $region21: #{tpu_custom_call.1} parent=1 // pred_fallthru
      _
    // Predicated region
    $region22: #{tpu_custom_call.1} parent=1 // pred_check
      _
    $region23: #{tpu_custom_call.1} parent=1 // pred_check_branch
      %37 = sbr.rel (0) target = $region25
    $region24: #{tpu_custom_call.1} parent=1 // pred_region
      %39 = vsyncadd [#allocation6], 0
      %s40 = sshll.u32 %s5, 4
      %s41 = int_to_ptr.hbm [resolvable:$true] %s40
      %s42 = sshll.u32 [#allocation5], 4
      %s43 = int_to_ptr.vmem [resolvable:$true] %s42
      %48 = dma.hbm_to_vmem [thread:$0]  %s41, 4096, %s43, [#allocation6], 64, 64, 4
    $region25: #{tpu_custom_call.1} parent=1 // pred_fallthru
      _
    // Predicated region
    $region26: #{tpu_custom_call.1} parent=1 // pred_check
      _
    $region27: #{tpu_custom_call.1} parent=1 // pred_check_branch
      %50 = sbr.rel (0) target = $region29
    $region28: #{tpu_custom_call.1} parent=1 // pred_region
      _
    $region29: #{tpu_custom_call.1} parent=1 // pred_fallthru
      _
    // Predicated region
    $region30: #{tpu_custom_call.1} parent=1 // pred_check
      _
    $region31: #{tpu_custom_call.1} parent=1 // pred_check_branch
      %52 = sbr.rel (0) target = $region33
    $region32: #{tpu_custom_call.1} parent=1 // pred_region
      %54 = dma.done [#allocation3], 16384
    $region33: #{tpu_custom_call.1} parent=1 // pred_fallthru
      _
    // Predicated region
    $region34: #{tpu_custom_call.1} parent=1 // pred_check
      _
    $region35: #{tpu_custom_call.1} parent=1 // pred_check_branch
      %56 = sbr.rel (0) target = $region37
    $region36: #{tpu_custom_call.1} parent=1 // pred_region
      %58 = dma.done [#allocation6], 4096
    $region37: #{tpu_custom_call.1} parent=1 // pred_fallthru
      _
    %v60 = vld [vmem:[%s0] sm:$0xff]
    %v61 = vld [vmem:[%s0 + $0x8] sm:$0xff]
    %v62 = vpack.c.bf16 %v61, %v60
    %v63 = vld [vmem:[%s1] sm:$0xff]
    %v64 = vld [vmem:[%s1 + $0x8] sm:$0xff]
    %v65 = vld [vmem:[%s2] sm:$0xf]
    %v67 = vperm.slane %v65, 0
    %v68 = vperm.slane %v65, 1
    %v69 = vperm.slane %v65, 2
    %v70 = vperm.slane %v65, 3
    %v77 = vunpack.c.l.b16 %v63
    %v78 = vunpack.c.h.b16 %v63
    %v79 = vunpack.c.l.b16 %v64
    %v80 = vunpack.c.h.b16 %v64
    %v81 = vpack.c.b16 %v77, %v77
    %v82 = vpack.c.b16 %v78, %v78
    %v83 = vpack.c.b16 %v79, %v79
    %v84 = vpack.c.b16 %v80, %v80
    %vm85 = vcmask 56320
    %v87 = vsel %vm85, %v62, 0
    %vm89 = vcmask 1042432
    %vm90 = vcmask 1043456
    %v91 = vsel %vm89, 4294967295, 65535
    %v92 = vsel %vm90, %v91, 0
    %v94 = vand.u32 %v81, %v92
    %v97 = vand.u32 %v82, %v92
    %v100 = vand.u32 %v83, %v92
    %v103 = vand.u32 %v84, %v92
    %105 = vmatpush.bf16.msra.mxu0 0
    %106 = vmatpush.bf16.msra.mxu0 0
    %107 = vmatpush.bf16.msra.mxu0 0
    %108 = vmatpush.bf16.msra.mxu0 0
    %109 = vmatpush.bf16.msra.mxu0 0
    %110 = vmatpush.bf16.msra.mxu0 0
    %111 = vmatpush.bf16.msra.mxu0 0
    %112 = vmatpush.bf16.msra.mxu0 %v94
    %113 = vmatmul.bf16.gmra.mxu0 %v87
    %v114 = vpop.f32.mrf.mxu0
    %v115 = vadd.f32 %v67, %v114
    %v116 = vpop.f32.mrf.mxu0
    %v117 = vadd.f32 %v67, %v116
    %118 = vdwg.mxu0
    %119 = vmatpush.bf16.msra.mxu0 0
    %120 = vmatpush.bf16.msra.mxu0 0
    %121 = vmatpush.bf16.msra.mxu0 0
    %122 = vmatpush.bf16.msra.mxu0 0
    %123 = vmatpush.bf16.msra.mxu0 0
    %124 = vmatpush.bf16.msra.mxu0 0
    %125 = vmatpush.bf16.msra.mxu0 0
    %126 = vmatpush.bf16.msra.mxu0 %v97
    %127 = vmatmul.bf16.gmra.mxu0 %v87
    %v128 = vpop.f32.mrf.mxu0
    %v129 = vadd.f32 %v68, %v128
    %v130 = vpop.f32.mrf.mxu0
    %v131 = vadd.f32 %v68, %v130
    %132 = vdwg.mxu0
    %133 = vmatpush.bf16.msra.mxu0 0
    %134 = vmatpush.bf16.msra.mxu0 0
    %135 = vmatpush.bf16.msra.mxu0 0
    %136 = vmatpush.bf16.msra.mxu0 0
    %137 = vmatpush.bf16.msra.mxu0 0
    %138 = vmatpush.bf16.msra.mxu0 0
    %139 = vmatpush.bf16.msra.mxu0 0
    %140 = vmatpush.bf16.msra.mxu0 %v100
    %141 = vmatmul.bf16.gmra.mxu0 %v87
    %v142 = vpop.f32.mrf.mxu0
    %v143 = vadd.f32 %v69, %v142
    %v144 = vpop.f32.mrf.mxu0
    %v145 = vadd.f32 %v69, %v144
    %146 = vdwg.mxu0
    %147 = vmatpush.bf16.msra.mxu0 0
    %148 = vmatpush.bf16.msra.mxu0 0
    %149 = vmatpush.bf16.msra.mxu0 0
    %150 = vmatpush.bf16.msra.mxu0 0
    %151 = vmatpush.bf16.msra.mxu0 0
    %152 = vmatpush.bf16.msra.mxu0 0
    %153 = vmatpush.bf16.msra.mxu0 0
    %154 = vmatpush.bf16.msra.mxu0 %v103
    %155 = vmatmul.bf16.gmra.mxu0 %v87
    %v156 = vpop.f32.mrf.mxu0
    %v157 = vadd.f32 %v70, %v156
    %v158 = vpop.f32.mrf.mxu0
    %v159 = vadd.f32 %v70, %v158
    %160 = vdwg.mxu0
    %v161 = vmax.f32 %v115, 0.0
    %v162 = vmax.f32 %v129, 0.0
    %v163 = vmax.f32 %v143, 0.0
    %v164 = vmax.f32 %v157, 0.0
    %v165 = vmax.f32 %v117, 0.0
    %v166 = vmax.f32 %v131, 0.0
    %v167 = vmax.f32 %v145, 0.0
    %v168 = vmax.f32 %v159, 0.0
    %v169 = vpack.c.bf16 %v165, %v161
    %v170 = vpack.c.bf16 %v166, %v162
    %v171 = vpack.c.bf16 %v167, %v163
    %v172 = vpack.c.bf16 %v168, %v164
    %v173 = vld [vmem:[#allocation2] sm:$0xff]
    %v174 = vld [vmem:[#allocation2 + $0x8] sm:$0xff]
    %v175 = vld [vmem:[#allocation2 + $0x10] sm:$0xff]
    %v176 = vld [vmem:[#allocation2 + $0x18] sm:$0xff]
    %v177 = vld [vmem:[#allocation2 + $0x20] sm:$0xff]
    %v178 = vld [vmem:[#allocation2 + $0x28] sm:$0xff]
    %v179 = vld [vmem:[#allocation2 + $0x30] sm:$0xff]
    %v180 = vld [vmem:[#allocation2 + $0x38] sm:$0xff]
    %v181 = vld [vmem:[#allocation2 + $0x40] sm:$0xff]
    %v182 = vld [vmem:[#allocation2 + $0x48] sm:$0xff]
    %v183 = vld [vmem:[#allocation2 + $0x50] sm:$0xff]
    %v184 = vld [vmem:[#allocation2 + $0x58] sm:$0xff]
    %v185 = vld [vmem:[#allocation2 + $0x60] sm:$0xff]
    %v186 = vld [vmem:[#allocation2 + $0x68] sm:$0xff]
    %v187 = vld [vmem:[#allocation2 + $0x70] sm:$0xff]
    %v188 = vld [vmem:[#allocation2 + $0x78] sm:$0xff]
    %v189 = vld [vmem:[#allocation2 + $0x80] sm:$0xff]
    %v190 = vld [vmem:[#allocation2 + $0x88] sm:$0xff]
    %v191 = vld [vmem:[#allocation2 + $0x90] sm:$0xff]
    %v192 = vld [vmem:[#allocation2 + $0x98] sm:$0xff]
    %v193 = vld [vmem:[#allocation2 + $0xa0] sm:$0xff]
    %v194 = vld [vmem:[#allocation2 + $0xa8] sm:$0xff]
    %v195 = vld [vmem:[#allocation2 + $0xb0] sm:$0xff]
    %v196 = vld [vmem:[#allocation2 + $0xb8] sm:$0xff]
    %v197 = vld [vmem:[#allocation2 + $0xc0] sm:$0xff]
    %v198 = vld [vmem:[#allocation2 + $0xc8] sm:$0xff]
    %v199 = vld [vmem:[#allocation2 + $0xd0] sm:$0xff]
    %v200 = vld [vmem:[#allocation2 + $0xd8] sm:$0xff]
    %v201 = vld [vmem:[#allocation2 + $0xe0] sm:$0xff]
    %v202 = vld [vmem:[#allocation2 + $0xe8] sm:$0xff]
    %v203 = vld [vmem:[#allocation2 + $0xf0] sm:$0xff]
    %v204 = vld [vmem:[#allocation2 + $0xf8] sm:$0xff]
    %v205 = vld [vmem:[#allocation2 + $0x100] sm:$0xff]
    %v206 = vld [vmem:[#allocation2 + $0x108] sm:$0xff]
    %v207 = vld [vmem:[#allocation2 + $0x110] sm:$0xff]
    %v208 = vld [vmem:[#allocation2 + $0x118] sm:$0xff]
    %v209 = vld [vmem:[#allocation2 + $0x120] sm:$0xff]
    %v210 = vld [vmem:[#allocation2 + $0x128] sm:$0xff]
    %v211 = vld [vmem:[#allocation2 + $0x130] sm:$0xff]
    %v212 = vld [vmem:[#allocation2 + $0x138] sm:$0xff]
    %v213 = vld [vmem:[#allocation2 + $0x140] sm:$0xff]
    %v214 = vld [vmem:[#allocation2 + $0x148] sm:$0xff]
    %v215 = vld [vmem:[#allocation2 + $0x150] sm:$0xff]
    %v216 = vld [vmem:[#allocation2 + $0x158] sm:$0xff]
    %v217 = vld [vmem:[#allocation2 + $0x160] sm:$0xff]
    %v218 = vld [vmem:[#allocation2 + $0x168] sm:$0xff]
    %v219 = vld [vmem:[#allocation2 + $0x170] sm:$0xff]
    %v220 = vld [vmem:[#allocation2 + $0x178] sm:$0xff]
    %v221 = vld [vmem:[#allocation2 + $0x180] sm:$0xff]
    %v222 = vld [vmem:[#allocation2 + $0x188] sm:$0xff]
    %v223 = vld [vmem:[#allocation2 + $0x190] sm:$0xff]
    %v224 = vld [vmem:[#allocation2 + $0x198] sm:$0xff]
    %v225 = vld [vmem:[#allocation2 + $0x1a0] sm:$0xff]
    %v226 = vld [vmem:[#allocation2 + $0x1a8] sm:$0xff]
    %v227 = vld [vmem:[#allocation2 + $0x1b0] sm:$0xff]
    %v228 = vld [vmem:[#allocation2 + $0x1b8] sm:$0xff]
    %v229 = vld [vmem:[#allocation2 + $0x1c0] sm:$0xff]
    %v230 = vld [vmem:[#allocation2 + $0x1c8] sm:$0xff]
    %v231 = vld [vmem:[#allocation2 + $0x1d0] sm:$0xff]
    %v232 = vld [vmem:[#allocation2 + $0x1d8] sm:$0xff]
    %v233 = vld [vmem:[#allocation2 + $0x1e0] sm:$0xff]
    %v234 = vld [vmem:[#allocation2 + $0x1e8] sm:$0xff]
    %v235 = vld [vmem:[#allocation2 + $0x1f0] sm:$0xff]
    %v236 = vld [vmem:[#allocation2 + $0x1f8] sm:$0xff]
    %v237 = vld [vmem:[#allocation2 + $0x200] sm:$0xff]
    %v238 = vld [vmem:[#allocation2 + $0x208] sm:$0xff]
    %v239 = vld [vmem:[#allocation2 + $0x210] sm:$0xff]
    %v240 = vld [vmem:[#allocation2 + $0x218] sm:$0xff]
    %v241 = vld [vmem:[#allocation2 + $0x220] sm:$0xff]
    %v242 = vld [vmem:[#allocation2 + $0x228] sm:$0xff]
    %v243 = vld [vmem:[#allocation2 + $0x230] sm:$0xff]
    %v244 = vld [vmem:[#allocation2 + $0x238] sm:$0xff]
    %v245 = vld [vmem:[#allocation2 + $0x240] sm:$0xff]
    %v246 = vld [vmem:[#allocation2 + $0x248] sm:$0xff]
    %v247 = vld [vmem:[#allocation2 + $0x250] sm:$0xff]
    %v248 = vld [vmem:[#allocation2 + $0x258] sm:$0xff]
    %v249 = vld [vmem:[#allocation2 + $0x260] sm:$0xff]
    %v250 = vld [vmem:[#allocation2 + $0x268] sm:$0xff]
    %v251 = vld [vmem:[#allocation2 + $0x270] sm:$0xff]
    %v252 = vld [vmem:[#allocation2 + $0x278] sm:$0xff]
    %v253 = vld [vmem:[#allocation2 + $0x280] sm:$0xff]
    %v254 = vld [vmem:[#allocation2 + $0x288] sm:$0xff]
    %v255 = vld [vmem:[#allocation2 + $0x290] sm:$0xff]
    %v256 = vld [vmem:[#allocation2 + $0x298] sm:$0xff]
    %v257 = vld [vmem:[#allocation2 + $0x2a0] sm:$0xff]
    %v258 = vld [vmem:[#allocation2 + $0x2a8] sm:$0xff]
    %v259 = vld [vmem:[#allocation2 + $0x2b0] sm:$0xff]
    %v260 = vld [vmem:[#allocation2 + $0x2b8] sm:$0xff]
    %v261 = vld [vmem:[#allocation2 + $0x2c0] sm:$0xff]
    %v262 = vld [vmem:[#allocation2 + $0x2c8] sm:$0xff]
    %v263 = vld [vmem:[#allocation2 + $0x2d0] sm:$0xff]
    %v264 = vld [vmem:[#allocation2 + $0x2d8] sm:$0xff]
    %v265 = vld [vmem:[#allocation2 + $0x2e0] sm:$0xff]
    %v266 = vld [vmem:[#allocation2 + $0x2e8] sm:$0xff]
    %v267 = vld [vmem:[#allocation2 + $0x2f0] sm:$0xff]
    %v268 = vld [vmem:[#allocation2 + $0x2f8] sm:$0xff]
    %v269 = vld [vmem:[#allocation2 + $0x300] sm:$0xff]
    %v270 = vld [vmem:[#allocation2 + $0x308] sm:$0xff]
    %v271 = vld [vmem:[#allocation2 + $0x310] sm:$0xff]
    %v272 = vld [vmem:[#allocation2 + $0x318] sm:$0xff]
    %v273 = vld [vmem:[#allocation2 + $0x320] sm:$0xff]
    %v274 = vld [vmem:[#allocation2 + $0x328] sm:$0xff]
    %v275 = vld [vmem:[#allocation2 + $0x330] sm:$0xff]
    %v276 = vld [vmem:[#allocation2 + $0x338] sm:$0xff]
    %v277 = vld [vmem:[#allocation2 + $0x340] sm:$0xff]
    %v278 = vld [vmem:[#allocation2 + $0x348] sm:$0xff]
    %v279 = vld [vmem:[#allocation2 + $0x350] sm:$0xff]
    %v280 = vld [vmem:[#allocation2 + $0x358] sm:$0xff]
    %v281 = vld [vmem:[#allocation2 + $0x360] sm:$0xff]
    %v282 = vld [vmem:[#allocation2 + $0x368] sm:$0xff]
    %v283 = vld [vmem:[#allocation2 + $0x370] sm:$0xff]
    %v284 = vld [vmem:[#allocation2 + $0x378] sm:$0xff]
    %v285 = vld [vmem:[#allocation2 + $0x380] sm:$0xff]
    %v286 = vld [vmem:[#allocation2 + $0x388] sm:$0xff]
    %v287 = vld [vmem:[#allocation2 + $0x390] sm:$0xff]
    %v288 = vld [vmem:[#allocation2 + $0x398] sm:$0xff]
    %v289 = vld [vmem:[#allocation2 + $0x3a0] sm:$0xff]
    %v290 = vld [vmem:[#allocation2 + $0x3a8] sm:$0xff]
    %v291 = vld [vmem:[#allocation2 + $0x3b0] sm:$0xff]
    %v292 = vld [vmem:[#allocation2 + $0x3b8] sm:$0xff]
    %v293 = vld [vmem:[#allocation2 + $0x3c0] sm:$0xff]
    %v294 = vld [vmem:[#allocation2 + $0x3c8] sm:$0xff]
    %v295 = vld [vmem:[#allocation2 + $0x3d0] sm:$0xff]
    %v296 = vld [vmem:[#allocation2 + $0x3d8] sm:$0xff]
    %v297 = vld [vmem:[#allocation2 + $0x3e0] sm:$0xff]
    %v298 = vld [vmem:[#allocation2 + $0x3e8] sm:$0xff]
    %v299 = vld [vmem:[#allocation2 + $0x3f0] sm:$0xff]
    %v300 = vld [vmem:[#allocation2 + $0x3f8] sm:$0xff]
    %v301 = vld [vmem:[%s4] sm:$0xf]
    %v303 = vperm.slane %v301, 0
    %v304 = vperm.slane %v301, 1
    %v305 = vperm.slane %v301, 2
    %v306 = vperm.slane %v301, 3
    %v439 = vunpack.c.l.b16 %v173
    %v440 = vunpack.c.h.b16 %v173
    %v441 = vunpack.c.l.b16 %v174
    %v442 = vunpack.c.h.b16 %v174
    %v443 = vunpack.c.l.b16 %v175
    %v444 = vunpack.c.h.b16 %v175
    %v445 = vunpack.c.l.b16 %v176
    %v446 = vunpack.c.h.b16 %v176
    %v447 = vunpack.c.l.b16 %v177
    %v448 = vunpack.c.h.b16 %v177
    %v449 = vunpack.c.l.b16 %v178
    %v450 = vunpack.c.h.b16 %v178
    %v451 = vunpack.c.l.b16 %v179
    %v452 = vunpack.c.h.b16 %v179
    %v453 = vunpack.c.l.b16 %v180
    %v454 = vunpack.c.h.b16 %v180
    %v455 = vunpack.c.l.b16 %v181
    %v456 = vunpack.c.h.b16 %v181
    %v457 = vunpack.c.l.b16 %v182
    %v458 = vunpack.c.h.b16 %v182
    %v459 = vunpack.c.l.b16 %v183
    %v460 = vunpack.c.h.b16 %v183
    %v461 = vunpack.c.l.b16 %v184
    %v462 = vunpack.c.h.b16 %v184
    %v463 = vunpack.c.l.b16 %v185
    %v464 = vunpack.c.h.b16 %v185
    %v465 = vunpack.c.l.b16 %v186
    %v466 = vunpack.c.h.b16 %v186
    %v467 = vunpack.c.l.b16 %v187
    %v468 = vunpack.c.h.b16 %v187
    %v469 = vunpack.c.l.b16 %v188
    %v470 = vunpack.c.h.b16 %v188
    %v471 = vunpack.c.l.b16 %v189
    %v472 = vunpack.c.h.b16 %v189
    %v473 = vunpack.c.l.b16 %v190
    %v474 = vunpack.c.h.b16 %v190
    %v475 = vunpack.c.l.b16 %v191
    %v476 = vunpack.c.h.b16 %v191
    %v477 = vunpack.c.l.b16 %v192
    %v478 = vunpack.c.h.b16 %v192
    %v479 = vunpack.c.l.b16 %v193
    %v480 = vunpack.c.h.b16 %v193
    %v481 = vunpack.c.l.b16 %v194
    %v482 = vunpack.c.h.b16 %v194
    %v483 = vunpack.c.l.b16 %v195
    %v484 = vunpack.c.h.b16 %v195
    %v485 = vunpack.c.l.b16 %v196
    %v486 = vunpack.c.h.b16 %v196
    %v487 = vunpack.c.l.b16 %v197
    %v488 = vunpack.c.h.b16 %v197
    %v489 = vunpack.c.l.b16 %v198
    %v490 = vunpack.c.h.b16 %v198
    %v491 = vunpack.c.l.b16 %v199
    %v492 = vunpack.c.h.b16 %v199
    %v493 = vunpack.c.l.b16 %v200
    %v494 = vunpack.c.h.b16 %v200
    %v495 = vunpack.c.l.b16 %v201
    %v496 = vunpack.c.h.b16 %v201
    %v497 = vunpack.c.l.b16 %v202
    %v498 = vunpack.c.h.b16 %v202
    %v499 = vunpack.c.l.b16 %v203
    %v500 = vunpack.c.h.b16 %v203
    %v501 = vunpack.c.l.b16 %v204
    %v502 = vunpack.c.h.b16 %v204
    %v503 = vunpack.c.l.b16 %v205
    %v504 = vunpack.c.h.b16 %v205
    %v505 = vunpack.c.l.b16 %v206
    %v506 = vunpack.c.h.b16 %v206
    %v507 = vunpack.c.l.b16 %v207
    %v508 = vunpack.c.h.b16 %v207
    %v509 = vunpack.c.l.b16 %v208
    %v510 = vunpack.c.h.b16 %v208
    %v511 = vunpack.c.l.b16 %v209
    %v512 = vunpack.c.h.b16 %v209
    %v513 = vunpack.c.l.b16 %v210
    %v514 = vunpack.c.h.b16 %v210
    %v515 = vunpack.c.l.b16 %v211
    %v516 = vunpack.c.h.b16 %v211
    %v517 = vunpack.c.l.b16 %v212
    %v518 = vunpack.c.h.b16 %v212
    %v519 = vunpack.c.l.b16 %v213
    %v520 = vunpack.c.h.b16 %v213
    %v521 = vunpack.c.l.b16 %v214
    %v522 = vunpack.c.h.b16 %v214
    %v523 = vunpack.c.l.b16 %v215
    %v524 = vunpack.c.h.b16 %v215
    %v525 = vunpack.c.l.b16 %v216
    %v526 = vunpack.c.h.b16 %v216
    %v527 = vunpack.c.l.b16 %v217
    %v528 = vunpack.c.h.b16 %v217
    %v529 = vunpack.c.l.b16 %v218
    %v530 = vunpack.c.h.b16 %v218
    %v531 = vunpack.c.l.b16 %v219
    %v532 = vunpack.c.h.b16 %v219
    %v533 = vunpack.c.l.b16 %v220
    %v534 = vunpack.c.h.b16 %v220
    %v535 = vunpack.c.l.b16 %v221
    %v536 = vunpack.c.h.b16 %v221
    %v537 = vunpack.c.l.b16 %v222
    %v538 = vunpack.c.h.b16 %v222
    %v539 = vunpack.c.l.b16 %v223
    %v540 = vunpack.c.h.b16 %v223
    %v541 = vunpack.c.l.b16 %v224
    %v542 = vunpack.c.h.b16 %v224
    %v543 = vunpack.c.l.b16 %v225
    %v544 = vunpack.c.h.b16 %v225
    %v545 = vunpack.c.l.b16 %v226
    %v546 = vunpack.c.h.b16 %v226
    %v547 = vunpack.c.l.b16 %v227
    %v548 = vunpack.c.h.b16 %v227
    %v549 = vunpack.c.l.b16 %v228
    %v550 = vunpack.c.h.b16 %v228
    %v551 = vunpack.c.l.b16 %v229
    %v552 = vunpack.c.h.b16 %v229
    %v553 = vunpack.c.l.b16 %v230
    %v554 = vunpack.c.h.b16 %v230
    %v555 = vunpack.c.l.b16 %v231
    %v556 = vunpack.c.h.b16 %v231
    %v557 = vunpack.c.l.b16 %v232
    %v558 = vunpack.c.h.b16 %v232
    %v559 = vunpack.c.l.b16 %v233
    %v560 = vunpack.c.h.b16 %v233
    %v561 = vunpack.c.l.b16 %v234
    %v562 = vunpack.c.h.b16 %v234
    %v563 = vunpack.c.l.b16 %v235
    %v564 = vunpack.c.h.b16 %v235
    %v565 = vunpack.c.l.b16 %v236
    %v566 = vunpack.c.h.b16 %v236
    %v567 = vunpack.c.l.b16 %v237
    %v568 = vunpack.c.h.b16 %v237
    %v569 = vunpack.c.l.b16 %v238
    %v570 = vunpack.c.h.b16 %v238
    %v571 = vunpack.c.l.b16 %v239
    %v572 = vunpack.c.h.b16 %v239
    %v573 = vunpack.c.l.b16 %v240
    %v574 = vunpack.c.h.b16 %v240
    %v575 = vunpack.c.l.b16 %v241
    %v576 = vunpack.c.h.b16 %v241
    %v577 = vunpack.c.l.b16 %v242
    %v578 = vunpack.c.h.b16 %v242
    %v579 = vunpack.c.l.b16 %v243
    %v580 = vunpack.c.h.b16 %v243
    %v581 = vunpack.c.l.b16 %v244
    %v582 = vunpack.c.h.b16 %v244
    %v583 = vunpack.c.l.b16 %v245
    %v584 = vunpack.c.h.b16 %v245
    %v585 = vunpack.c.l.b16 %v246
    %v586 = vunpack.c.h.b16 %v246
    %v587 = vunpack.c.l.b16 %v247
    %v588 = vunpack.c.h.b16 %v247
    %v589 = vunpack.c.l.b16 %v248
    %v590 = vunpack.c.h.b16 %v248
    %v591 = vunpack.c.l.b16 %v249
    %v592 = vunpack.c.h.b16 %v249
    %v593 = vunpack.c.l.b16 %v250
    %v594 = vunpack.c.h.b16 %v250
    %v595 = vunpack.c.l.b16 %v251
    %v596 = vunpack.c.h.b16 %v251
    %v597 = vunpack.c.l.b16 %v252
    %v598 = vunpack.c.h.b16 %v252
    %v599 = vunpack.c.l.b16 %v253
    %v600 = vunpack.c.h.b16 %v253
    %v601 = vunpack.c.l.b16 %v254
    %v602 = vunpack.c.h.b16 %v254
    %v603 = vunpack.c.l.b16 %v255
    %v604 = vunpack.c.h.b16 %v255
    %v605 = vunpack.c.l.b16 %v256
    %v606 = vunpack.c.h.b16 %v256
    %v607 = vunpack.c.l.b16 %v257
    %v608 = vunpack.c.h.b16 %v257
    %v609 = vunpack.c.l.b16 %v258
    %v610 = vunpack.c.h.b16 %v258
    %v611 = vunpack.c.l.b16 %v259
    %v612 = vunpack.c.h.b16 %v259
    %v613 = vunpack.c.l.b16 %v260
    %v614 = vunpack.c.h.b16 %v260
    %v615 = vunpack.c.l.b16 %v261
    %v616 = vunpack.c.h.b16 %v261
    %v617 = vunpack.c.l.b16 %v262
    %v618 = vunpack.c.h.b16 %v262
    %v619 = vunpack.c.l.b16 %v263
    %v620 = vunpack.c.h.b16 %v263
    %v621 = vunpack.c.l.b16 %v264
    %v622 = vunpack.c.h.b16 %v264
    %v623 = vunpack.c.l.b16 %v265
    %v624 = vunpack.c.h.b16 %v265
    %v625 = vunpack.c.l.b16 %v266
    %v626 = vunpack.c.h.b16 %v266
    %v627 = vunpack.c.l.b16 %v267
    %v628 = vunpack.c.h.b16 %v267
    %v629 = vunpack.c.l.b16 %v268
    %v630 = vunpack.c.h.b16 %v268
    %v631 = vunpack.c.l.b16 %v269
    %v632 = vunpack.c.h.b16 %v269
    %v633 = vunpack.c.l.b16 %v270
    %v634 = vunpack.c.h.b16 %v270
    %v635 = vunpack.c.l.b16 %v271
    %v636 = vunpack.c.h.b16 %v271
    %v637 = vunpack.c.l.b16 %v272
    %v638 = vunpack.c.h.b16 %v272
    %v639 = vunpack.c.l.b16 %v273
    %v640 = vunpack.c.h.b16 %v273
    %v641 = vunpack.c.l.b16 %v274
    %v642 = vunpack.c.h.b16 %v274
    %v643 = vunpack.c.l.b16 %v275
    %v644 = vunpack.c.h.b16 %v275
    %v645 = vunpack.c.l.b16 %v276
    %v646 = vunpack.c.h.b16 %v276
    %v647 = vunpack.c.l.b16 %v277
    %v648 = vunpack.c.h.b16 %v277
    %v649 = vunpack.c.l.b16 %v278
    %v650 = vunpack.c.h.b16 %v278
    %v651 = vunpack.c.l.b16 %v279
    %v652 = vunpack.c.h.b16 %v279
    %v653 = vunpack.c.l.b16 %v280
    %v654 = vunpack.c.h.b16 %v280
    %v655 = vunpack.c.l.b16 %v281
    %v656 = vunpack.c.h.b16 %v281
    %v657 = vunpack.c.l.b16 %v282
    %v658 = vunpack.c.h.b16 %v282
    %v659 = vunpack.c.l.b16 %v283
    %v660 = vunpack.c.h.b16 %v283
    %v661 = vunpack.c.l.b16 %v284
    %v662 = vunpack.c.h.b16 %v284
    %v663 = vunpack.c.l.b16 %v285
    %v664 = vunpack.c.h.b16 %v285
    %v665 = vunpack.c.l.b16 %v286
    %v666 = vunpack.c.h.b16 %v286
    %v667 = vunpack.c.l.b16 %v287
    %v668 = vunpack.c.h.b16 %v287
    %v669 = vunpack.c.l.b16 %v288
    %v670 = vunpack.c.h.b16 %v288
    %v671 = vunpack.c.l.b16 %v289
    %v672 = vunpack.c.h.b16 %v289
    %v673 = vunpack.c.l.b16 %v290
    %v674 = vunpack.c.h.b16 %v290
    %v675 = vunpack.c.l.b16 %v291
    %v676 = vunpack.c.h.b16 %v291
    %v677 = vunpack.c.l.b16 %v292
    %v678 = vunpack.c.h.b16 %v292
    %v679 = vunpack.c.l.b16 %v293
    %v680 = vunpack.c.h.b16 %v293
    %v681 = vunpack.c.l.b16 %v294
    %v682 = vunpack.c.h.b16 %v294
    %v683 = vunpack.c.l.b16 %v295
    %v684 = vunpack.c.h.b16 %v295
    %v685 = vunpack.c.l.b16 %v296
    %v686 = vunpack.c.h.b16 %v296
    %v687 = vunpack.c.l.b16 %v297
    %v688 = vunpack.c.h.b16 %v297
    %v689 = vunpack.c.l.b16 %v298
    %v690 = vunpack.c.h.b16 %v298
    %v691 = vunpack.c.l.b16 %v299
    %v692 = vunpack.c.h.b16 %v299
    %v693 = vunpack.c.l.b16 %v300
    %v694 = vunpack.c.h.b16 %v300
    %v695 = vpack.c.b16 %v443, %v439
    %v696 = vpack.c.b16 %v444, %v440
    %v697 = vpack.c.b16 %v445, %v441
    %v698 = vpack.c.b16 %v446, %v442
    %v699 = vpack.c.b16 %v451, %v447
    %v700 = vpack.c.b16 %v452, %v448
    %v701 = vpack.c.b16 %v453, %v449
    %v702 = vpack.c.b16 %v454, %v450
    %v703 = vpack.c.b16 %v459, %v455
    %v704 = vpack.c.b16 %v460, %v456
    %v705 = vpack.c.b16 %v461, %v457
    %v706 = vpack.c.b16 %v462, %v458
    %v707 = vpack.c.b16 %v467, %v463
    %v708 = vpack.c.b16 %v468, %v464
    %v709 = vpack.c.b16 %v469, %v465
    %v710 = vpack.c.b16 %v470, %v466
    %v711 = vpack.c.b16 %v475, %v471
    %v712 = vpack.c.b16 %v476, %v472
    %v713 = vpack.c.b16 %v477, %v473
    %v714 = vpack.c.b16 %v478, %v474
    %v715 = vpack.c.b16 %v483, %v479
    %v716 = vpack.c.b16 %v484, %v480
    %v717 = vpack.c.b16 %v485, %v481
    %v718 = vpack.c.b16 %v486, %v482
    %v719 = vpack.c.b16 %v491, %v487
    %v720 = vpack.c.b16 %v492, %v488
    %v721 = vpack.c.b16 %v493, %v489
    %v722 = vpack.c.b16 %v494, %v490
    %v723 = vpack.c.b16 %v499, %v495
    %v724 = vpack.c.b16 %v500, %v496
    %v725 = vpack.c.b16 %v501, %v497
    %v726 = vpack.c.b16 %v502, %v498
    %v727 = vpack.c.b16 %v507, %v503
    %v728 = vpack.c.b16 %v508, %v504
    %v729 = vpack.c.b16 %v509, %v505
    %v730 = vpack.c.b16 %v510, %v506
    %v731 = vpack.c.b16 %v515, %v511
    %v732 = vpack.c.b16 %v516, %v512
    %v733 = vpack.c.b16 %v517, %v513
    %v734 = vpack.c.b16 %v518, %v514
    %v735 = vpack.c.b16 %v523, %v519
    %v736 = vpack.c.b16 %v524, %v520
    %v737 = vpack.c.b16 %v525, %v521
    %v738 = vpack.c.b16 %v526, %v522
    %v739 = vpack.c.b16 %v531, %v527
    %v740 = vpack.c.b16 %v532, %v528
    %v741 = vpack.c.b16 %v533, %v529
    %v742 = vpack.c.b16 %v534, %v530
    %v743 = vpack.c.b16 %v539, %v535
    %v744 = vpack.c.b16 %v540, %v536
    %v745 = vpack.c.b16 %v541, %v537
    %v746 = vpack.c.b16 %v542, %v538
    %v747 = vpack.c.b16 %v547, %v543
    %v748 = vpack.c.b16 %v548, %v544
    %v749 = vpack.c.b16 %v549, %v545
    %v750 = vpack.c.b16 %v550, %v546
    %v751 = vpack.c.b16 %v555, %v551
    %v752 = vpack.c.b16 %v556, %v552
    %v753 = vpack.c.b16 %v557, %v553
    %v754 = vpack.c.b16 %v558, %v554
    %v755 = vpack.c.b16 %v563, %v559
    %v756 = vpack.c.b16 %v564, %v560
    %v757 = vpack.c.b16 %v565, %v561
    %v758 = vpack.c.b16 %v566, %v562
    %v759 = vpack.c.b16 %v571, %v567
    %v760 = vpack.c.b16 %v572, %v568
    %v761 = vpack.c.b16 %v573, %v569
    %v762 = vpack.c.b16 %v574, %v570
    %v763 = vpack.c.b16 %v579, %v575
    %v764 = vpack.c.b16 %v580, %v576
    %v765 = vpack.c.b16 %v581, %v577
    %v766 = vpack.c.b16 %v582, %v578
    %v767 = vpack.c.b16 %v587, %v583
    %v768 = vpack.c.b16 %v588, %v584
    %v769 = vpack.c.b16 %v589, %v585
    %v770 = vpack.c.b16 %v590, %v586
    %v771 = vpack.c.b16 %v595, %v591
    %v772 = vpack.c.b16 %v596, %v592
    %v773 = vpack.c.b16 %v597, %v593
    %v774 = vpack.c.b16 %v598, %v594
    %v775 = vpack.c.b16 %v603, %v599
    %v776 = vpack.c.b16 %v604, %v600
    %v777 = vpack.c.b16 %v605, %v601
    %v778 = vpack.c.b16 %v606, %v602
    %v779 = vpack.c.b16 %v611, %v607
    %v780 = vpack.c.b16 %v612, %v608
    %v781 = vpack.c.b16 %v613, %v609
    %v782 = vpack.c.b16 %v614, %v610
    %v783 = vpack.c.b16 %v619, %v615
    %v784 = vpack.c.b16 %v620, %v616
    %v785 = vpack.c.b16 %v621, %v617
    %v786 = vpack.c.b16 %v622, %v618
    %v787 = vpack.c.b16 %v627, %v623
    %v788 = vpack.c.b16 %v628, %v624
    %v789 = vpack.c.b16 %v629, %v625
    %v790 = vpack.c.b16 %v630, %v626
    %v791 = vpack.c.b16 %v635, %v631
    %v792 = vpack.c.b16 %v636, %v632
    %v793 = vpack.c.b16 %v637, %v633
    %v794 = vpack.c.b16 %v638, %v634
    %v795 = vpack.c.b16 %v643, %v639
    %v796 = vpack.c.b16 %v644, %v640
    %v797 = vpack.c.b16 %v645, %v641
    %v798 = vpack.c.b16 %v646, %v642
    %v799 = vpack.c.b16 %v651, %v647
    %v800 = vpack.c.b16 %v652, %v648
    %v801 = vpack.c.b16 %v653, %v649
    %v802 = vpack.c.b16 %v654, %v650
    %v803 = vpack.c.b16 %v659, %v655
    %v804 = vpack.c.b16 %v660, %v656
    %v805 = vpack.c.b16 %v661, %v657
    %v806 = vpack.c.b16 %v662, %v658
    %v807 = vpack.c.b16 %v667, %v663
    %v808 = vpack.c.b16 %v668, %v664
    %v809 = vpack.c.b16 %v669, %v665
    %v810 = vpack.c.b16 %v670, %v666
    %v811 = vpack.c.b16 %v675, %v671
    %v812 = vpack.c.b16 %v676, %v672
    %v813 = vpack.c.b16 %v677, %v673
    %v814 = vpack.c.b16 %v678, %v674
    %v815 = vpack.c.b16 %v683, %v679
    %v816 = vpack.c.b16 %v684, %v680
    %v817 = vpack.c.b16 %v685, %v681
    %v818 = vpack.c.b16 %v686, %v682
    %v819 = vpack.c.b16 %v691, %v687
    %v820 = vpack.c.b16 %v692, %v688
    %v821 = vpack.c.b16 %v693, %v689
    %v822 = vpack.c.b16 %v694, %v690
    %951 = vmatpush.bf16.msra.mxu0 %v723
    %952 = vmatpush.bf16.msra.mxu0 %v719
    %953 = vmatpush.bf16.msra.mxu0 %v715
    %954 = vmatpush.bf16.msra.mxu0 %v711
    %955 = vmatpush.bf16.msra.mxu0 %v707
    %956 = vmatpush.bf16.msra.mxu0 %v703
    %957 = vmatpush.bf16.msra.mxu0 %v699
    %958 = vmatpush.bf16.msra.mxu0 %v695
    %959 = vmatmul.bf16.gmra.mxu0 %v169
    %v960 = vpop.f32.mrf.mxu0
    %v961 = vadd.f32 %v303, %v960
    %v962 = vpop.f32.mrf.mxu0
    %v963 = vadd.f32 %v303, %v962
    %964 = vdwg.mxu0
    %965 = vmatpush.bf16.msra.mxu0 %v755
    %966 = vmatpush.bf16.msra.mxu0 %v751
    %967 = vmatpush.bf16.msra.mxu0 %v747
    %968 = vmatpush.bf16.msra.mxu0 %v743
    %969 = vmatpush.bf16.msra.mxu0 %v739
    %970 = vmatpush.bf16.msra.mxu0 %v735
    %971 = vmatpush.bf16.msra.mxu0 %v731
    %972 = vmatpush.bf16.msra.mxu0 %v727
    %973 = vmatmul.bf16.gmra.mxu0 %v170
    %v974 = vpop.f32.mrf.mxu0
    %v975 = vadd.f32 %v961, %v974
    %v976 = vpop.f32.mrf.mxu0
    %v977 = vadd.f32 %v963, %v976
    %978 = vdwg.mxu0
    %979 = vmatpush.bf16.msra.mxu0 %v787
    %980 = vmatpush.bf16.msra.mxu0 %v783
    %981 = vmatpush.bf16.msra.mxu0 %v779
    %982 = vmatpush.bf16.msra.mxu0 %v775
    %983 = vmatpush.bf16.msra.mxu0 %v771
    %984 = vmatpush.bf16.msra.mxu0 %v767
    %985 = vmatpush.bf16.msra.mxu0 %v763
    %986 = vmatpush.bf16.msra.mxu0 %v759
    %987 = vmatmul.bf16.gmra.mxu0 %v171
    %v988 = vpop.f32.mrf.mxu0
    %v989 = vadd.f32 %v975, %v988
    %v990 = vpop.f32.mrf.mxu0
    %v991 = vadd.f32 %v977, %v990
    %992 = vdwg.mxu0
    %993 = vmatpush.bf16.msra.mxu0 %v819
    %994 = vmatpush.bf16.msra.mxu0 %v815
    %995 = vmatpush.bf16.msra.mxu0 %v811
    %996 = vmatpush.bf16.msra.mxu0 %v807
    %997 = vmatpush.bf16.msra.mxu0 %v803
    %998 = vmatpush.bf16.msra.mxu0 %v799
    %999 = vmatpush.bf16.msra.mxu0 %v795
    %1000 = vmatpush.bf16.msra.mxu0 %v791
    %1001 = vmatmul.bf16.gmra.mxu0 %v172
    %v1002 = vpop.f32.mrf.mxu0
    %v1003 = vadd.f32 %v989, %v1002
    %v1004 = vpop.f32.mrf.mxu0
    %v1005 = vadd.f32 %v991, %v1004
    %1006 = vdwg.mxu0
    %1007 = vmatpush.bf16.msra.mxu0 %v724
    %1008 = vmatpush.bf16.msra.mxu0 %v720
    %1009 = vmatpush.bf16.msra.mxu0 %v716
    %1010 = vmatpush.bf16.msra.mxu0 %v712
    %1011 = vmatpush.bf16.msra.mxu0 %v708
    %1012 = vmatpush.bf16.msra.mxu0 %v704
    %1013 = vmatpush.bf16.msra.mxu0 %v700
    %1014 = vmatpush.bf16.msra.mxu0 %v696
    %1015 = vmatmul.bf16.gmra.mxu0 %v169
    %v1016 = vpop.f32.mrf.mxu0
    %v1017 = vadd.f32 %v304, %v1016
    %v1018 = vpop.f32.mrf.mxu0
    %v1019 = vadd.f32 %v304, %v1018
    %1020 = vdwg.mxu0
    %1021 = vmatpush.bf16.msra.mxu0 %v756
    %1022 = vmatpush.bf16.msra.mxu0 %v752
    %1023 = vmatpush.bf16.msra.mxu0 %v748
    %1024 = vmatpush.bf16.msra.mxu0 %v744
    %1025 = vmatpush.bf16.msra.mxu0 %v740
    %1026 = vmatpush.bf16.msra.mxu0 %v736
    %1027 = vmatpush.bf16.msra.mxu0 %v732
    %1028 = vmatpush.bf16.msra.mxu0 %v728
    %1029 = vmatmul.bf16.gmra.mxu0 %v170
    %v1030 = vpop.f32.mrf.mxu0
    %v1031 = vadd.f32 %v1017, %v1030
    %v1032 = vpop.f32.mrf.mxu0
    %v1033 = vadd.f32 %v1019, %v1032
    %1034 = vdwg.mxu0
    %1035 = vmatpush.bf16.msra.mxu0 %v788
    %1036 = vmatpush.bf16.msra.mxu0 %v784
    %1037 = vmatpush.bf16.msra.mxu0 %v780
    %1038 = vmatpush.bf16.msra.mxu0 %v776
    %1039 = vmatpush.bf16.msra.mxu0 %v772
    %1040 = vmatpush.bf16.msra.mxu0 %v768
    %1041 = vmatpush.bf16.msra.mxu0 %v764
    %1042 = vmatpush.bf16.msra.mxu0 %v760
    %1043 = vmatmul.bf16.gmra.mxu0 %v171
    %v1044 = vpop.f32.mrf.mxu0
    %v1045 = vadd.f32 %v1031, %v1044
    %v1046 = vpop.f32.mrf.mxu0
    %v1047 = vadd.f32 %v1033, %v1046
    %1048 = vdwg.mxu0
    %1049 = vmatpush.bf16.msra.mxu0 %v820
    %1050 = vmatpush.bf16.msra.mxu0 %v816
    %1051 = vmatpush.bf16.msra.mxu0 %v812
    %1052 = vmatpush.bf16.msra.mxu0 %v808
    %1053 = vmatpush.bf16.msra.mxu0 %v804
    %1054 = vmatpush.bf16.msra.mxu0 %v800
    %1055 = vmatpush.bf16.msra.mxu0 %v796
    %1056 = vmatpush.bf16.msra.mxu0 %v792
    %1057 = vmatmul.bf16.gmra.mxu0 %v172
    %v1058 = vpop.f32.mrf.mxu0
    %v1059 = vadd.f32 %v1045, %v1058
    %v1060 = vpop.f32.mrf.mxu0
    %v1061 = vadd.f32 %v1047, %v1060
    %1062 = vdwg.mxu0
    %1063 = vmatpush.bf16.msra.mxu0 %v725
    %1064 = vmatpush.bf16.msra.mxu0 %v721
    %1065 = vmatpush.bf16.msra.mxu0 %v717
    %1066 = vmatpush.bf16.msra.mxu0 %v713
    %1067 = vmatpush.bf16.msra.mxu0 %v709
    %1068 = vmatpush.bf16.msra.mxu0 %v705
    %1069 = vmatpush.bf16.msra.mxu0 %v701
    %1070 = vmatpush.bf16.msra.mxu0 %v697
    %1071 = vmatmul.bf16.gmra.mxu0 %v169
    %v1072 = vpop.f32.mrf.mxu0
    %v1073 = vadd.f32 %v305, %v1072
    %v1074 = vpop.f32.mrf.mxu0
    %v1075 = vadd.f32 %v305, %v1074
    %1076 = vdwg.mxu0
    %1077 = vmatpush.bf16.msra.mxu0 %v757
    %1078 = vmatpush.bf16.msra.mxu0 %v753
    %1079 = vmatpush.bf16.msra.mxu0 %v749
    %1080 = vmatpush.bf16.msra.mxu0 %v745
    %1081 = vmatpush.bf16.msra.mxu0 %v741
    %1082 = vmatpush.bf16.msra.mxu0 %v737
    %1083 = vmatpush.bf16.msra.mxu0 %v733
    %1084 = vmatpush.bf16.msra.mxu0 %v729
    %1085 = vmatmul.bf16.gmra.mxu0 %v170
    %v1086 = vpop.f32.mrf.mxu0
    %v1087 = vadd.f32 %v1073, %v1086
    %v1088 = vpop.f32.mrf.mxu0
    %v1089 = vadd.f32 %v1075, %v1088
    %1090 = vdwg.mxu0
    %1091 = vmatpush.bf16.msra.mxu0 %v789
    %1092 = vmatpush.bf16.msra.mxu0 %v785
    %1093 = vmatpush.bf16.msra.mxu0 %v781
    %1094 = vmatpush.bf16.msra.mxu0 %v777
    %1095 = vmatpush.bf16.msra.mxu0 %v773
    %1096 = vmatpush.bf16.msra.mxu0 %v769
    %1097 = vmatpush.bf16.msra.mxu0 %v765
    %1098 = vmatpush.bf16.msra.mxu0 %v761
    %1099 = vmatmul.bf16.gmra.mxu0 %v171
    %v1100 = vpop.f32.mrf.mxu0
    %v1101 = vadd.f32 %v1087, %v1100
    %v1102 = vpop.f32.mrf.mxu0
    %v1103 = vadd.f32 %v1089, %v1102
    %1104 = vdwg.mxu0
    %1105 = vmatpush.bf16.msra.mxu0 %v821
    %1106 = vmatpush.bf16.msra.mxu0 %v817
    %1107 = vmatpush.bf16.msra.mxu0 %v813
    %1108 = vmatpush.bf16.msra.mxu0 %v809
    %1109 = vmatpush.bf16.msra.mxu0 %v805
    %1110 = vmatpush.bf16.msra.mxu0 %v801
    %1111 = vmatpush.bf16.msra.mxu0 %v797
    %1112 = vmatpush.bf16.msra.mxu0 %v793
    %1113 = vmatmul.bf16.gmra.mxu0 %v172
    %v1114 = vpop.f32.mrf.mxu0
    %v1115 = vadd.f32 %v1101, %v1114
    %v1116 = vpop.f32.mrf.mxu0
    %v1117 = vadd.f32 %v1103, %v1116
    %1118 = vdwg.mxu0
    %1119 = vmatpush.bf16.msra.mxu0 %v726
    %1120 = vmatpush.bf16.msra.mxu0 %v722
    %1121 = vmatpush.bf16.msra.mxu0 %v718
    %1122 = vmatpush.bf16.msra.mxu0 %v714
    %1123 = vmatpush.bf16.msra.mxu0 %v710
    %1124 = vmatpush.bf16.msra.mxu0 %v706
    %1125 = vmatpush.bf16.msra.mxu0 %v702
    %1126 = vmatpush.bf16.msra.mxu0 %v698
    %1127 = vmatmul.bf16.gmra.mxu0 %v169
    %v1128 = vpop.f32.mrf.mxu0
    %v1129 = vadd.f32 %v306, %v1128
    %v1130 = vpop.f32.mrf.mxu0
    %v1131 = vadd.f32 %v306, %v1130
    %1132 = vdwg.mxu0
    %1133 = vmatpush.bf16.msra.mxu0 %v758
    %1134 = vmatpush.bf16.msra.mxu0 %v754
    %1135 = vmatpush.bf16.msra.mxu0 %v750
    %1136 = vmatpush.bf16.msra.mxu0 %v746
    %1137 = vmatpush.bf16.msra.mxu0 %v742
    %1138 = vmatpush.bf16.msra.mxu0 %v738
    %1139 = vmatpush.bf16.msra.mxu0 %v734
    %1140 = vmatpush.bf16.msra.mxu0 %v730
    %1141 = vmatmul.bf16.gmra.mxu0 %v170
    %v1142 = vpop.f32.mrf.mxu0
    %v1143 = vadd.f32 %v1129, %v1142
    %v1144 = vpop.f32.mrf.mxu0
    %v1145 = vadd.f32 %v1131, %v1144
    %1146 = vdwg.mxu0
    %1147 = vmatpush.bf16.msra.mxu0 %v790
    %1148 = vmatpush.bf16.msra.mxu0 %v786
    %1149 = vmatpush.bf16.msra.mxu0 %v782
    %1150 = vmatpush.bf16.msra.mxu0 %v778
    %1151 = vmatpush.bf16.msra.mxu0 %v774
    %1152 = vmatpush.bf16.msra.mxu0 %v770
    %1153 = vmatpush.bf16.msra.mxu0 %v766
    %1154 = vmatpush.bf16.msra.mxu0 %v762
    %1155 = vmatmul.bf16.gmra.mxu0 %v171
    %v1156 = vpop.f32.mrf.mxu0
    %v1157 = vadd.f32 %v1143, %v1156
    %v1158 = vpop.f32.mrf.mxu0
    %v1159 = vadd.f32 %v1145, %v1158
    %1160 = vdwg.mxu0
    %1161 = vmatpush.bf16.msra.mxu0 %v822
    %1162 = vmatpush.bf16.msra.mxu0 %v818
    %1163 = vmatpush.bf16.msra.mxu0 %v814
    %1164 = vmatpush.bf16.msra.mxu0 %v810
    %1165 = vmatpush.bf16.msra.mxu0 %v806
    %1166 = vmatpush.bf16.msra.mxu0 %v802
    %1167 = vmatpush.bf16.msra.mxu0 %v798
    %1168 = vmatpush.bf16.msra.mxu0 %v794
    %1169 = vmatmul.bf16.gmra.mxu0 %v172
    %v1170 = vpop.f32.mrf.mxu0
    %v1171 = vadd.f32 %v1157, %v1170
    %v1172 = vpop.f32.mrf.mxu0
    %v1173 = vadd.f32 %v1159, %v1172
    %1174 = vdwg.mxu0
    %v1175 = vmax.f32 %v1003, 0.0
    %v1176 = vmax.f32 %v1059, 0.0
    %v1177 = vmax.f32 %v1115, 0.0
    %v1178 = vmax.f32 %v1171, 0.0
    %v1179 = vmax.f32 %v1005, 0.0
    %v1180 = vmax.f32 %v1061, 0.0
    %v1181 = vmax.f32 %v1117, 0.0
    %v1182 = vmax.f32 %v1173, 0.0
    %v1183 = vpack.c.bf16 %v1179, %v1175
    %v1184 = vpack.c.bf16 %v1180, %v1176
    %v1185 = vpack.c.bf16 %v1181, %v1177
    %v1186 = vpack.c.bf16 %v1182, %v1178
    %v1187 = vld [vmem:[#allocation5] sm:$0xf]
    %v1188 = vld [vmem:[#allocation5 + $0x4] sm:$0xf]
    %v1189 = vld [vmem:[#allocation5 + $0x8] sm:$0xf]
    %v1190 = vld [vmem:[#allocation5 + $0xc] sm:$0xf]
    %v1191 = vld [vmem:[#allocation5 + $0x10] sm:$0xf]
    %v1192 = vld [vmem:[#allocation5 + $0x14] sm:$0xf]
    %v1193 = vld [vmem:[#allocation5 + $0x18] sm:$0xf]
    %v1194 = vld [vmem:[#allocation5 + $0x1c] sm:$0xf]
    %v1195 = vld [vmem:[#allocation5 + $0x20] sm:$0xf]
    %v1196 = vld [vmem:[#allocation5 + $0x24] sm:$0xf]
    %v1197 = vld [vmem:[#allocation5 + $0x28] sm:$0xf]
    %v1198 = vld [vmem:[#allocation5 + $0x2c] sm:$0xf]
    %v1199 = vld [vmem:[#allocation5 + $0x30] sm:$0xf]
    %v1200 = vld [vmem:[#allocation5 + $0x34] sm:$0xf]
    %v1201 = vld [vmem:[#allocation5 + $0x38] sm:$0xf]
    %v1202 = vld [vmem:[#allocation5 + $0x3c] sm:$0xf]
    %v1203 = vld [vmem:[#allocation5 + $0x40] sm:$0xf]
    %v1204 = vld [vmem:[#allocation5 + $0x44] sm:$0xf]
    %v1205 = vld [vmem:[#allocation5 + $0x48] sm:$0xf]
    %v1206 = vld [vmem:[#allocation5 + $0x4c] sm:$0xf]
    %v1207 = vld [vmem:[#allocation5 + $0x50] sm:$0xf]
    %v1208 = vld [vmem:[#allocation5 + $0x54] sm:$0xf]
    %v1209 = vld [vmem:[#allocation5 + $0x58] sm:$0xf]
    %v1210 = vld [vmem:[#allocation5 + $0x5c] sm:$0xf]
    %v1211 = vld [vmem:[#allocation5 + $0x60] sm:$0xf]
    %v1212 = vld [vmem:[#allocation5 + $0x64] sm:$0xf]
    %v1213 = vld [vmem:[#allocation5 + $0x68] sm:$0xf]
    %v1214 = vld [vmem:[#allocation5 + $0x6c] sm:$0xf]
    %v1215 = vld [vmem:[#allocation5 + $0x70] sm:$0xf]
    %v1216 = vld [vmem:[#allocation5 + $0x74] sm:$0xf]
    %v1217 = vld [vmem:[#allocation5 + $0x78] sm:$0xf]
    %v1218 = vld [vmem:[#allocation5 + $0x7c] sm:$0xf]
    %v1219 = vld [vmem:[#allocation5 + $0x80] sm:$0xf]
    %v1220 = vld [vmem:[#allocation5 + $0x84] sm:$0xf]
    %v1221 = vld [vmem:[#allocation5 + $0x88] sm:$0xf]
    %v1222 = vld [vmem:[#allocation5 + $0x8c] sm:$0xf]
    %v1223 = vld [vmem:[#allocation5 + $0x90] sm:$0xf]
    %v1224 = vld [vmem:[#allocation5 + $0x94] sm:$0xf]
    %v1225 = vld [vmem:[#allocation5 + $0x98] sm:$0xf]
    %v1226 = vld [vmem:[#allocation5 + $0x9c] sm:$0xf]
    %v1227 = vld [vmem:[#allocation5 + $0xa0] sm:$0xf]
    %v1228 = vld [vmem:[#allocation5 + $0xa4] sm:$0xf]
    %v1229 = vld [vmem:[#allocation5 + $0xa8] sm:$0xf]
    %v1230 = vld [vmem:[#allocation5 + $0xac] sm:$0xf]
    %v1231 = vld [vmem:[#allocation5 + $0xb0] sm:$0xf]
    %v1232 = vld [vmem:[#allocation5 + $0xb4] sm:$0xf]
    %v1233 = vld [vmem:[#allocation5 + $0xb8] sm:$0xf]
    %v1234 = vld [vmem:[#allocation5 + $0xbc] sm:$0xf]
    %v1235 = vld [vmem:[#allocation5 + $0xc0] sm:$0xf]
    %v1236 = vld [vmem:[#allocation5 + $0xc4] sm:$0xf]
    %v1237 = vld [vmem:[#allocation5 + $0xc8] sm:$0xf]
    %v1238 = vld [vmem:[#allocation5 + $0xcc] sm:$0xf]
    %v1239 = vld [vmem:[#allocation5 + $0xd0] sm:$0xf]
    %v1240 = vld [vmem:[#allocation5 + $0xd4] sm:$0xf]
    %v1241 = vld [vmem:[#allocation5 + $0xd8] sm:$0xf]
    %v1242 = vld [vmem:[#allocation5 + $0xdc] sm:$0xf]
    %v1243 = vld [vmem:[#allocation5 + $0xe0] sm:$0xf]
    %v1244 = vld [vmem:[#allocation5 + $0xe4] sm:$0xf]
    %v1245 = vld [vmem:[#allocation5 + $0xe8] sm:$0xf]
    %v1246 = vld [vmem:[#allocation5 + $0xec] sm:$0xf]
    %v1247 = vld [vmem:[#allocation5 + $0xf0] sm:$0xf]
    %v1248 = vld [vmem:[#allocation5 + $0xf4] sm:$0xf]
    %v1249 = vld [vmem:[#allocation5 + $0xf8] sm:$0xf]
    %v1250 = vld [vmem:[#allocation5 + $0xfc] sm:$0xf]
    %v1251 = vld [vmem:[%s6] sm:$0x1]
    %v1253 = vperm.slane %v1251, 0
    %v1319 = vunpack.c.l.b16 %v1187
    %v1320 = vunpack.c.l.b16 %v1188
    %v1321 = vunpack.c.l.b16 %v1189
    %v1322 = vunpack.c.l.b16 %v1190
    %v1323 = vunpack.c.l.b16 %v1191
    %v1324 = vunpack.c.l.b16 %v1192
    %v1325 = vunpack.c.l.b16 %v1193
    %v1326 = vunpack.c.l.b16 %v1194
    %v1327 = vunpack.c.l.b16 %v1195
    %v1328 = vunpack.c.l.b16 %v1196
    %v1329 = vunpack.c.l.b16 %v1197
    %v1330 = vunpack.c.l.b16 %v1198
    %v1331 = vunpack.c.l.b16 %v1199
    %v1332 = vunpack.c.l.b16 %v1200
    %v1333 = vunpack.c.l.b16 %v1201
    %v1334 = vunpack.c.l.b16 %v1202
    %v1335 = vunpack.c.l.b16 %v1203
    %v1336 = vunpack.c.l.b16 %v1204
    %v1337 = vunpack.c.l.b16 %v1205
    %v1338 = vunpack.c.l.b16 %v1206
    %v1339 = vunpack.c.l.b16 %v1207
    %v1340 = vunpack.c.l.b16 %v1208
    %v1341 = vunpack.c.l.b16 %v1209
    %v1342 = vunpack.c.l.b16 %v1210
    %v1343 = vunpack.c.l.b16 %v1211
    %v1344 = vunpack.c.l.b16 %v1212
    %v1345 = vunpack.c.l.b16 %v1213
    %v1346 = vunpack.c.l.b16 %v1214
    %v1347 = vunpack.c.l.b16 %v1215
    %v1348 = vunpack.c.l.b16 %v1216
    %v1349 = vunpack.c.l.b16 %v1217
    %v1350 = vunpack.c.l.b16 %v1218
    %v1351 = vunpack.c.l.b16 %v1219
    %v1352 = vunpack.c.l.b16 %v1220
    %v1353 = vunpack.c.l.b16 %v1221
    %v1354 = vunpack.c.l.b16 %v1222
    %v1355 = vunpack.c.l.b16 %v1223
    %v1356 = vunpack.c.l.b16 %v1224
    %v1357 = vunpack.c.l.b16 %v1225
    %v1358 = vunpack.c.l.b16 %v1226
    %v1359 = vunpack.c.l.b16 %v1227
    %v1360 = vunpack.c.l.b16 %v1228
    %v1361 = vunpack.c.l.b16 %v1229
    %v1362 = vunpack.c.l.b16 %v1230
    %v1363 = vunpack.c.l.b16 %v1231
    %v1364 = vunpack.c.l.b16 %v1232
    %v1365 = vunpack.c.l.b16 %v1233
    %v1366 = vunpack.c.l.b16 %v1234
    %v1367 = vunpack.c.l.b16 %v1235
    %v1368 = vunpack.c.l.b16 %v1236
    %v1369 = vunpack.c.l.b16 %v1237
    %v1370 = vunpack.c.l.b16 %v1238
    %v1371 = vunpack.c.l.b16 %v1239
    %v1372 = vunpack.c.l.b16 %v1240
    %v1373 = vunpack.c.l.b16 %v1241
    %v1374 = vunpack.c.l.b16 %v1242
    %v1375 = vunpack.c.l.b16 %v1243
    %v1376 = vunpack.c.l.b16 %v1244
    %v1377 = vunpack.c.l.b16 %v1245
    %v1378 = vunpack.c.l.b16 %v1246
    %v1379 = vunpack.c.l.b16 %v1247
    %v1380 = vunpack.c.l.b16 %v1248
    %v1381 = vunpack.c.l.b16 %v1249
    %v1382 = vunpack.c.l.b16 %v1250
    %v1383 = vpack.c.b16 %v1320, %v1319
    %v1384 = vpack.c.b16 %v1322, %v1321
    %v1385 = vpack.c.b16 %v1324, %v1323
    %v1386 = vpack.c.b16 %v1326, %v1325
    %v1387 = vpack.c.b16 %v1328, %v1327
    %v1388 = vpack.c.b16 %v1330, %v1329
    %v1389 = vpack.c.b16 %v1332, %v1331
    %v1390 = vpack.c.b16 %v1334, %v1333
    %v1391 = vpack.c.b16 %v1336, %v1335
    %v1392 = vpack.c.b16 %v1338, %v1337
    %v1393 = vpack.c.b16 %v1340, %v1339
    %v1394 = vpack.c.b16 %v1342, %v1341
    %v1395 = vpack.c.b16 %v1344, %v1343
    %v1396 = vpack.c.b16 %v1346, %v1345
    %v1397 = vpack.c.b16 %v1348, %v1347
    %v1398 = vpack.c.b16 %v1350, %v1349
    %v1399 = vpack.c.b16 %v1352, %v1351
    %v1400 = vpack.c.b16 %v1354, %v1353
    %v1401 = vpack.c.b16 %v1356, %v1355
    %v1402 = vpack.c.b16 %v1358, %v1357
    %v1403 = vpack.c.b16 %v1360, %v1359
    %v1404 = vpack.c.b16 %v1362, %v1361
    %v1405 = vpack.c.b16 %v1364, %v1363
    %v1406 = vpack.c.b16 %v1366, %v1365
    %v1407 = vpack.c.b16 %v1368, %v1367
    %v1408 = vpack.c.b16 %v1370, %v1369
    %v1409 = vpack.c.b16 %v1372, %v1371
    %v1410 = vpack.c.b16 %v1374, %v1373
    %v1411 = vpack.c.b16 %v1376, %v1375
    %v1412 = vpack.c.b16 %v1378, %v1377
    %v1413 = vpack.c.b16 %v1380, %v1379
    %v1414 = vpack.c.b16 %v1382, %v1381
    %1447 = vmatpush.bf16.msra.mxu0 %v1390
    %1448 = vmatpush.bf16.msra.mxu0 %v1389
    %1449 = vmatpush.bf16.msra.mxu0 %v1388
    %1450 = vmatpush.bf16.msra.mxu0 %v1387
    %1451 = vmatpush.bf16.msra.mxu0 %v1386
    %1452 = vmatpush.bf16.msra.mxu0 %v1385
    %1453 = vmatpush.bf16.msra.mxu0 %v1384
    %1454 = vmatpush.bf16.msra.mxu0 %v1383
    %1455 = vmatmul.bf16.gmra.mxu0 %v1183
    %v1456 = vpop.f32.mrf.mxu0
    %v1457 = vadd.f32 %v1253, %v1456
    %v1458 = vpop.f32.mrf.mxu0
    %v1459 = vadd.f32 %v1253, %v1458
    %1460 = vdwg.mxu0
    %1461 = vmatpush.bf16.msra.mxu0 %v1398
    %1462 = vmatpush.bf16.msra.mxu0 %v1397
    %1463 = vmatpush.bf16.msra.mxu0 %v1396
    %1464 = vmatpush.bf16.msra.mxu0 %v1395
    %1465 = vmatpush.bf16.msra.mxu0 %v1394
    %1466 = vmatpush.bf16.msra.mxu0 %v1393
    %1467 = vmatpush.bf16.msra.mxu0 %v1392
    %1468 = vmatpush.bf16.msra.mxu0 %v1391
    %1469 = vmatmul.bf16.gmra.mxu0 %v1184
    %v1470 = vpop.f32.mrf.mxu0
    %v1471 = vadd.f32 %v1457, %v1470
    %v1472 = vpop.f32.mrf.mxu0
    %v1473 = vadd.f32 %v1459, %v1472
    %1474 = vdwg.mxu0
    %1475 = vmatpush.bf16.msra.mxu0 %v1406
    %1476 = vmatpush.bf16.msra.mxu0 %v1405
    %1477 = vmatpush.bf16.msra.mxu0 %v1404
    %1478 = vmatpush.bf16.msra.mxu0 %v1403
    %1479 = vmatpush.bf16.msra.mxu0 %v1402
    %1480 = vmatpush.bf16.msra.mxu0 %v1401
    %1481 = vmatpush.bf16.msra.mxu0 %v1400
    %1482 = vmatpush.bf16.msra.mxu0 %v1399
    %1483 = vmatmul.bf16.gmra.mxu0 %v1185
    %v1484 = vpop.f32.mrf.mxu0
    %v1485 = vadd.f32 %v1471, %v1484
    %v1486 = vpop.f32.mrf.mxu0
    %v1487 = vadd.f32 %v1473, %v1486
    %1488 = vdwg.mxu0
    %1489 = vmatpush.bf16.msra.mxu0 %v1414
    %1490 = vmatpush.bf16.msra.mxu0 %v1413
    %1491 = vmatpush.bf16.msra.mxu0 %v1412
    %1492 = vmatpush.bf16.msra.mxu0 %v1411
    %1493 = vmatpush.bf16.msra.mxu0 %v1410
    %1494 = vmatpush.bf16.msra.mxu0 %v1409
    %1495 = vmatpush.bf16.msra.mxu0 %v1408
    %1496 = vmatpush.bf16.msra.mxu0 %v1407
    %1497 = vmatmul.bf16.gmra.mxu0 %v1186
    %v1498 = vpop.f32.mrf.mxu0
    %v1499 = vadd.f32 %v1485, %v1498
    %v1500 = vpop.f32.mrf.mxu0
    %v1501 = vadd.f32 %v1487, %v1500
    %1502 = vdwg.mxu0
    %v1503 = vpack.c.bf16 %v1499, %v1499
    %v1504 = vpack.c.bf16 %v1501, %v1501
    %1505 = vst [vmem:[#allocation7] sm:$0xf] %v1503
    %1506 = vst [vmem:[#allocation7 + $0x4] sm:$0xf] %v1504
    // Predicated region
    $region38: #{tpu_custom_call.1} parent=1 // pred_check
      _
    $region39: #{tpu_custom_call.1} parent=1 // pred_check_branch
      %1508 = sbr.rel (0) target = $region41
    $region40: #{tpu_custom_call.1} parent=1 // pred_region
      %1510 = vsyncadd [#allocation4], 0
      %s1511 = sshll.u32 [#allocation7], 4
      %s1512 = int_to_ptr.vmem [resolvable:$true] %s1511
      %s1513 = sshll.u32 %s7, 4
      %s1514 = int_to_ptr.hbm [resolvable:$true] %s1513
      %1519 = dma.vmem_to_hbm [thread:$0]  %s1512, 128, %s1514, [#allocation4], 64, 64, 4
    $region41: #{tpu_custom_call.1} parent=1 // pred_fallthru
      _
    // Predicated region
    $region42: #{tpu_custom_call.1} parent=1 // pred_check
      _
    $region43: #{tpu_custom_call.1} parent=1 // pred_check_branch
      %1521 = sbr.rel (0) target = $region45
    $region44: #{tpu_custom_call.1} parent=1 // pred_region
      %1523 = dma.done [#allocation4], 128
    $region45: #{tpu_custom_call.1} parent=1 // pred_fallthru
      _
    %1524 = vsyncpa [#allocation3], 1
    %1525 = vsyncpa [#allocation6], 1
    %1526 = vsyncpa [#allocation4], 1

</llo_original>
